<compile_context>
chip_gen: v7x
topology: tpu7x:2x2x1
jax: 0.10.0
libtpu: 0.0.40
codegen_flags: <defaults>
</compile_context>

<pallas_src>
import functools

import jax
import jax.numpy as jnp
from jax.experimental import pallas as pl
from jax.experimental.pallas import tpu as pltpu


def _dense_block_kernel(x_ref, w_ref, scale_ref, shift_ref, o_ref, af_ref, p_ref, *, W):
    # x_ref:     (1, C, H*W)          input, flattened spatial on the lane axis
    # w_ref:     (C, 9*C)             conv weight, out_scale folded in:
    #                                 w2[co, (dh*3+dw)*C + ci] = w[co, ci, dh, dw] * out_scale
    # scale_ref: (C, 1)               BN scale = gamma / sqrt(var + eps)
    # shift_ref: (C, 1)               BN shift = beta - mean * scale
    # o_ref:     (1, C, H*W)
    # af_ref:    (C, H*W + 2*(W+1))   scratch: zero-padded flat activation
    # p_ref:     (9*C, H*W)           scratch: im2col matrix
    _, C, HW = x_ref.shape
    pad = W + 1

    # BatchNorm (inference affine) + ReLU; spatial on lanes, per-channel params
    # broadcast along lanes.
    a = jnp.maximum(x_ref[0] * scale_ref[...] + shift_ref[...], 0.0)       # (C, HW)

    # Zero-padded flat activation.  The W+1 zeros on each side supply the
    # top/bottom conv halo rows of every tap.  (Pads are re-zeroed every grid
    # step: scratch is uninitialized and the batch axis may be megacore-split.)
    af_ref[:, :pad] = jnp.zeros((C, pad), jnp.float32)
    af_ref[:, pad + HW:] = jnp.zeros((C, pad), jnp.float32)
    af_ref[:, pad:pad + HW] = a

    # Column-edge masks: taps with dw=0 (dw=2) would read the previous (next)
    # row's last (first) column at w=0 (w=W-1) and must be zeroed there.
    col = jax.lax.broadcasted_iota(jnp.int32, (1, HW), 1) % W
    left_edge = col == 0
    right_edge = col == W - 1

    # im2col: 9 static lane-shifted views of the padded activation -> (9C, HW).
    for dh in range(3):
        for dw in range(3):
            s0 = pad + (dh - 1) * W + (dw - 1)
            t = af_ref[:, s0:s0 + HW]                                      # (C, HW)
            if dw == 0:
                t = jnp.where(left_edge, 0.0, t)
            elif dw == 2:
                t = jnp.where(right_edge, 0.0, t)
            r0 = (dh * 3 + dw) * C
            p_ref[r0:r0 + C, :] = t

    # One MXU matmul (contraction 9C) instead of 9 tiny dots; f32 accumulate.
    # The constant output scale is already baked into w_ref.
    o_ref[0] = jnp.dot(w_ref[...], p_ref[...],
                       preferred_element_type=jnp.float32).astype(o_ref.dtype)


def dense_block_encoder_forward(x_nchw, conv_w_oihw, gamma, beta, run_mean,
                                run_var, n_convs, eps=1e-5):
    N, C, H, W = x_nchw.shape
    HW = H * W

    # Free reshape: spatial goes onto the lane axis.
    x_flat = x_nchw.reshape(N, C, HW).astype(jnp.float32)

    out_scale = 1.0 if n_convs == 1 else float(2 ** (n_convs - 2))
    # OIHW -> (C_out, 3, 3, C_in) -> (C_out, 9*C_in), constant scale folded in.
    w2 = (jnp.transpose(conv_w_oihw, (0, 2, 3, 1)).reshape(C, 9 * C)
          * out_scale).astype(jnp.float32)

    scale = (gamma / jnp.sqrt(run_var + eps)).astype(jnp.float32).reshape(C, 1)
    shift = (beta.astype(jnp.float32).reshape(C, 1)
             - run_mean.astype(jnp.float32).reshape(C, 1) * scale)

    # Explicit VMEM budget: double-buffered in/out blocks + scratch + constants,
    # with generous headroom (tiny at these shapes).
    blk = C * HW * 4
    scratch_bytes = (C * (HW + 2 * (W + 1)) + 9 * C * HW + 9 * C * C + 2 * C) * 4
    vmem_limit = int(min(64 * 2 ** 20,
                         max(16 * 2 ** 20, 4 * (4 * blk + scratch_bytes))))

    kernel = functools.partial(_dense_block_kernel, W=W)
    out_flat = pl.pallas_call(
        kernel,
        out_shape=jax.ShapeDtypeStruct((N, C, HW), jnp.float32),
        grid=(N,),
        in_specs=[
            pl.BlockSpec((1, C, HW), lambda n: (n, 0, 0)),
            pl.BlockSpec((C, 9 * C), lambda n: (0, 0)),   # constant -> fetched once
            pl.BlockSpec((C, 1), lambda n: (0, 0)),
            pl.BlockSpec((C, 1), lambda n: (0, 0)),
        ],
        out_specs=pl.BlockSpec((1, C, HW), lambda n: (n, 0, 0)),
        scratch_shapes=[
            pltpu.VMEM((C, HW + 2 * (W + 1)), jnp.float32),
            pltpu.VMEM((9 * C, HW), jnp.float32),
        ],
        compiler_params=pltpu.CompilerParams(
            dimension_semantics=("parallel",),
            vmem_limit_bytes=vmem_limit,
        ),
    )(x_flat, w2, scale, shift)

    return out_flat.reshape(N, C, H, W)     # free reshape back to NCHW


if __name__ == "__main__":
    N, C, H, W = 2, 4, 16, 16
    n_convs = 3   # module has n_convs layers, but only layer 0's conv is ever applied

    key = jax.random.PRNGKey(0)
    k_x, k_w, k_g, k_b, k_m, k_v = jax.random.split(key, 6)

    x = jax.random.normal(k_x, (N, C, H, W), jnp.float32)
    conv_w = 0.1 * jax.random.normal(k_w, (C, C, 3, 3), jnp.float32)   # layer-0 Conv2d weight
    gamma = 1.0 + 0.1 * jax.random.normal(k_g, (C,), jnp.float32)      # layer-0 BN params
    beta = 0.1 * jax.random.normal(k_b, (C,), jnp.float32)
    run_mean = 0.1 * jax.random.normal(k_m, (C,), jnp.float32)
    run_var = jnp.abs(1.0 + 0.1 * jax.random.normal(k_v, (C,), jnp.float32))

    out = dense_block_encoder_forward(x, conv_w, gamma, beta, run_mean, run_var, n_convs)
    out = jax.block_until_ready(out)

    # Pure-JAX reference (same eval-mode BN semantics).
    eps = 1e-5
    s = gamma / jnp.sqrt(run_var + eps)
    a = jnp.maximum((x - run_mean[None, :, None, None]) * s[None, :, None, None]
                    + beta[None, :, None, None], 0.0)
    ref = jax.lax.conv_general_dilated(a, conv_w, (1, 1), "SAME",
                                       dimension_numbers=("NCHW", "OIHW", "NCHW"))
    ref = ref * (1.0 if n_convs == 1 else 2.0 ** (n_convs - 2))
    assert out.shape == (N, C, H, W)
    assert jnp.allclose(out, ref, atol=1e-4, rtol=1e-4), "mismatch vs reference"

    print("KERNEL_OK")
</pallas_src>

<mosaic_0001>
module attributes {stable_mosaic.version = 11 : i64} {
  func.func @_dense_block_kernel(%arg0: i32, %arg1: memref<1x4x256xf32, #tpu.memory_space<vmem>>, %arg2: memref<4x36xf32, #tpu.memory_space<vmem>>, %arg3: memref<4x1xf32, #tpu.memory_space<vmem>>, %arg4: memref<4x1xf32, #tpu.memory_space<vmem>>, %arg5: memref<1x4x256xf32, #tpu.memory_space<vmem>>, %arg6: memref<4x290xf32, #tpu.memory_space<vmem>>, %arg7: memref<36x256xf32, #tpu.memory_space<vmem>>) attributes {dimension_semantics = [#tpu.dimension_semantics<parallel>], iteration_bounds = array<i64: 2>, scalar_prefetch = 0 : i64, scratch_operands = 2 : i64, tpu.core_type = #tpu.core_type<tc>, window_params = [{transform_indices = @transform_0, window_bounds = array<i64: 1, 4, 256>}, {pipeline_mode = #tpu.pipeline_mode<synchronous>, transform_indices = @transform_1, window_bounds = array<i64: 4, 36>}, {pipeline_mode = #tpu.pipeline_mode<synchronous>, transform_indices = @transform_2, window_bounds = array<i64: 4, 1>}, {pipeline_mode = #tpu.pipeline_mode<synchronous>, transform_indices = @transform_3, window_bounds = array<i64: 4, 1>}, {transform_indices = @transform_4, window_bounds = array<i64: 1, 4, 256>}]} {
    %c0 = arith.constant 0 : index
    %c0_0 = arith.constant 0 : index
    %c0_1 = arith.constant 0 : index
    %0 = vector.load %arg1[%c0, %c0_0, %c0_1] : memref<1x4x256xf32, #tpu.memory_space<vmem>>, vector<1x4x256xf32>
    %1 = vector.shape_cast %0 : vector<1x4x256xf32> to vector<4x256xf32>
    %c0_2 = arith.constant 0 : index
    %c0_3 = arith.constant 0 : index
    %2 = vector.load %arg3[%c0_2, %c0_3] : memref<4x1xf32, #tpu.memory_space<vmem>>, vector<4x1xf32>
    %3 = vector.broadcast %2 : vector<4x1xf32> to vector<4x256xf32>
    %4 = arith.mulf %1, %3 : vector<4x256xf32>
    %c0_4 = arith.constant 0 : index
    %c0_5 = arith.constant 0 : index
    %5 = vector.load %arg4[%c0_4, %c0_5] : memref<4x1xf32, #tpu.memory_space<vmem>>, vector<4x1xf32>
    %6 = vector.broadcast %5 : vector<4x1xf32> to vector<4x256xf32>
    %7 = arith.addf %4, %6 : vector<4x256xf32>
    %cst = arith.constant 0.000000e+00 : f32
    %8 = vector.broadcast %cst : f32 to vector<4x256xf32>
    %9 = arith.maximumf %7, %8 : vector<4x256xf32>
    %cst_6 = arith.constant 0.000000e+00 : f32
    %10 = vector.broadcast %cst_6 : f32 to vector<4x17xf32>
    %c0_7 = arith.constant 0 : index
    %c0_8 = arith.constant 0 : index
    %11 = vector.load %arg6[%c0_7, %c0_8] : memref<4x290xf32, #tpu.memory_space<vmem>>, vector<4x17xf32>
    tpu.vector_store %arg6[%c0_7, %c0_8], %10 {strides = array<i32>} : memref<4x290xf32, #tpu.memory_space<vmem>>, vector<4x17xf32>,
    %cst_9 = arith.constant 0.000000e+00 : f32
    %12 = vector.broadcast %cst_9 : f32 to vector<4x17xf32>
    %c0_10 = arith.constant 0 : index
    %c273 = arith.constant 273 : index
    %13 = vector.load %arg6[%c0_10, %c273] : memref<4x290xf32, #tpu.memory_space<vmem>>, vector<4x17xf32>
    tpu.vector_store %arg6[%c0_10, %c273], %12 {strides = array<i32>} : memref<4x290xf32, #tpu.memory_space<vmem>>, vector<4x17xf32>,
    %c0_11 = arith.constant 0 : index
    %c17 = arith.constant 17 : index
    %14 = vector.load %arg6[%c0_11, %c17] : memref<4x290xf32, #tpu.memory_space<vmem>>, vector<4x256xf32>
    tpu.vector_store %arg6[%c0_11, %c17], %9 {strides = array<i32>} : memref<4x290xf32, #tpu.memory_space<vmem>>, vector<4x256xf32>,
    %15 = tpu.iota {dimensions = array<i32: 1>} : vector<1x256xi32>
    %c16_i32 = arith.constant 16 : i32
    %c0_i32 = arith.constant 0 : i32
    %16 = arith.cmpi eq, %c16_i32, %c0_i32 : i32
    %c1_i32 = arith.constant 1 : i32
    %17 = arith.select %16, %c1_i32, %c16_i32 : i32
    %18 = vector.broadcast %17 : i32 to vector<1x256xi32>
    %19 = arith.remsi %15, %18 : vector<1x256xi32>
    %c0_i32_12 = arith.constant 0 : i32
    %20 = vector.broadcast %c0_i32_12 : i32 to vector<1x256xi32>
    %21 = arith.cmpi ne, %19, %20 : vector<1x256xi32>
    %c0_i32_13 = arith.constant 0 : i32
    %22 = vector.broadcast %c0_i32_13 : i32 to vector<1x256xi32>
    %23 = arith.cmpi slt, %19, %22 : vector<1x256xi32>
    %c0_i32_14 = arith.constant 0 : i32
    %24 = arith.cmpi slt, %17, %c0_i32_14 : i32
    %25 = vector.broadcast %24 : i1 to vector<1x256xi1>
    %26 = vector.broadcast %25 : vector<1x256xi1> to vector<1x256xi1>
    %27 = arith.xori %23, %26 : vector<1x256xi1>
    %28 = arith.andi %27, %21 : vector<1x256xi1>
    %29 = vector.broadcast %17 : i32 to vector<1x256xi32>
    %30 = arith.addi %19, %29 : vector<1x256xi32>
    %31 = arith.select %28, %30, %19 : vector<1x256xi1>, vector<1x256xi32>
    %c0_i32_15 = arith.constant 0 : i32
    %32 = vector.broadcast %c0_i32_15 : i32 to vector<1x256xi32>
    %33 = arith.cmpi eq, %31, %32 : vector<1x256xi32>
    %c15_i32 = arith.constant 15 : i32
    %34 = vector.broadcast %c15_i32 : i32 to vector<1x256xi32>
    %35 = arith.cmpi eq, %31, %34 : vector<1x256xi32>
    %c0_16 = arith.constant 0 : index
    %c0_17 = arith.constant 0 : index
    %36 = vector.load %arg6[%c0_16, %c0_17] : memref<4x290xf32, #tpu.memory_space<vmem>>, vector<4x256xf32>
    %cst_18 = arith.constant 0.000000e+00 : f32
    %37 = vector.shape_cast %33 : vector<1x256xi1> to vector<1x256xi1>
    %38 = vector.broadcast %37 : vector<1x256xi1> to vector<4x256xi1>
    %39 = vector.broadcast %cst_18 : f32 to vector<4x256xf32>
    %40 = arith.select %38, %39, %36 : vector<4x256xi1>, vector<4x256xf32>
    %c0_19 = arith.constant 0 : index
    %c0_20 = arith.constant 0 : index
    %41 = vector.load %arg7[%c0_19, %c0_20] : memref<36x256xf32, #tpu.memory_space<vmem>>, vector<4x256xf32>
    tpu.vector_store %arg7[%c0_19, %c0_20], %40 {strides = array<i32>} : memref<36x256xf32, #tpu.memory_space<vmem>>, vector<4x256xf32>,
    %c0_21 = arith.constant 0 : index
    %c1 = arith.constant 1 : index
    %42 = vector.load %arg6[%c0_21, %c1] : memref<4x290xf32, #tpu.memory_space<vmem>>, vector<4x256xf32>
    %c4 = arith.constant 4 : index
    %c0_22 = arith.constant 0 : index
    %43 = vector.load %arg7[%c4, %c0_22] : memref<36x256xf32, #tpu.memory_space<vmem>>, vector<4x256xf32>
    tpu.vector_store %arg7[%c4, %c0_22], %42 {strides = array<i32>} : memref<36x256xf32, #tpu.memory_space<vmem>>, vector<4x256xf32>,
    %c0_23 = arith.constant 0 : index
    %c2 = arith.constant 2 : index
    %44 = vector.load %arg6[%c0_23, %c2] : memref<4x290xf32, #tpu.memory_space<vmem>>, vector<4x256xf32>
    %cst_24 = arith.constant 0.000000e+00 : f32
    %45 = vector.shape_cast %35 : vector<1x256xi1> to vector<1x256xi1>
    %46 = vector.broadcast %45 : vector<1x256xi1> to vector<4x256xi1>
    %47 = vector.broadcast %cst_24 : f32 to vector<4x256xf32>
    %48 = arith.select %46, %47, %44 : vector<4x256xi1>, vector<4x256xf32>
    %c8 = arith.constant 8 : index
    %c0_25 = arith.constant 0 : index
    %49 = vector.load %arg7[%c8, %c0_25] : memref<36x256xf32, #tpu.memory_space<vmem>>, vector<4x256xf32>
    tpu.vector_store %arg7[%c8, %c0_25], %48 {strides = array<i32>} : memref<36x256xf32, #tpu.memory_space<vmem>>, vector<4x256xf32>,
    %c0_26 = arith.constant 0 : index
    %c16 = arith.constant 16 : index
    %50 = vector.load %arg6[%c0_26, %c16] : memref<4x290xf32, #tpu.memory_space<vmem>>, vector<4x256xf32>
    %cst_27 = arith.constant 0.000000e+00 : f32
    %51 = vector.shape_cast %33 : vector<1x256xi1> to vector<1x256xi1>
    %52 = vector.broadcast %51 : vector<1x256xi1> to vector<4x256xi1>
    %53 = vector.broadcast %cst_27 : f32 to vector<4x256xf32>
    %54 = arith.select %52, %53, %50 : vector<4x256xi1>, vector<4x256xf32>
    %c12 = arith.constant 12 : index
    %c0_28 = arith.constant 0 : index
    %55 = vector.load %arg7[%c12, %c0_28] : memref<36x256xf32, #tpu.memory_space<vmem>>, vector<4x256xf32>
    tpu.vector_store %arg7[%c12, %c0_28], %54 {strides = array<i32>} : memref<36x256xf32, #tpu.memory_space<vmem>>, vector<4x256xf32>,
    %c0_29 = arith.constant 0 : index
    %c17_30 = arith.constant 17 : index
    %56 = vector.load %arg6[%c0_29, %c17_30] : memref<4x290xf32, #tpu.memory_space<vmem>>, vector<4x256xf32>
    %c16_31 = arith.constant 16 : index
    %c0_32 = arith.constant 0 : index
    %57 = vector.load %arg7[%c16_31, %c0_32] : memref<36x256xf32, #tpu.memory_space<vmem>>, vector<4x256xf32>
    tpu.vector_store %arg7[%c16_31, %c0_32], %56 {strides = array<i32>} : memref<36x256xf32, #tpu.memory_space<vmem>>, vector<4x256xf32>,
    %c0_33 = arith.constant 0 : index
    %c18 = arith.constant 18 : index
    %58 = vector.load %arg6[%c0_33, %c18] : memref<4x290xf32, #tpu.memory_space<vmem>>, vector<4x256xf32>
    %cst_34 = arith.constant 0.000000e+00 : f32
    %59 = vector.shape_cast %35 : vector<1x256xi1> to vector<1x256xi1>
    %60 = vector.broadcast %59 : vector<1x256xi1> to vector<4x256xi1>
    %61 = vector.broadcast %cst_34 : f32 to vector<4x256xf32>
    %62 = arith.select %60, %61, %58 : vector<4x256xi1>, vector<4x256xf32>
    %c20 = arith.constant 20 : index
    %c0_35 = arith.constant 0 : index
    %63 = vector.load %arg7[%c20, %c0_35] : memref<36x256xf32, #tpu.memory_space<vmem>>, vector<4x256xf32>
    tpu.vector_store %arg7[%c20, %c0_35], %62 {strides = array<i32>} : memref<36x256xf32, #tpu.memory_space<vmem>>, vector<4x256xf32>,
    %c0_36 = arith.constant 0 : index
    %c32 = arith.constant 32 : index
    %64 = vector.load %arg6[%c0_36, %c32] : memref<4x290xf32, #tpu.memory_space<vmem>>, vector<4x256xf32>
    %cst_37 = arith.constant 0.000000e+00 : f32
    %65 = vector.shape_cast %33 : vector<1x256xi1> to vector<1x256xi1>
    %66 = vector.broadcast %65 : vector<1x256xi1> to vector<4x256xi1>
    %67 = vector.broadcast %cst_37 : f32 to vector<4x256xf32>
    %68 = arith.select %66, %67, %64 : vector<4x256xi1>, vector<4x256xf32>
    %c24 = arith.constant 24 : index
    %c0_38 = arith.constant 0 : index
    %69 = vector.load %arg7[%c24, %c0_38] : memref<36x256xf32, #tpu.memory_space<vmem>>, vector<4x256xf32>
    tpu.vector_store %arg7[%c24, %c0_38], %68 {strides = array<i32>} : memref<36x256xf32, #tpu.memory_space<vmem>>, vector<4x256xf32>,
    %c0_39 = arith.constant 0 : index
    %c33 = arith.constant 33 : index
    %70 = vector.load %arg6[%c0_39, %c33] : memref<4x290xf32, #tpu.memory_space<vmem>>, vector<4x256xf32>
    %c28 = arith.constant 28 : index
    %c0_40 = arith.constant 0 : index
    %71 = vector.load %arg7[%c28, %c0_40] : memref<36x256xf32, #tpu.memory_space<vmem>>, vector<4x256xf32>
    tpu.vector_store %arg7[%c28, %c0_40], %70 {strides = array<i32>} : memref<36x256xf32, #tpu.memory_space<vmem>>, vector<4x256xf32>,
    %c0_41 = arith.constant 0 : index
    %c34 = arith.constant 34 : index
    %72 = vector.load %arg6[%c0_41, %c34] : memref<4x290xf32, #tpu.memory_space<vmem>>, vector<4x256xf32>
    %cst_42 = arith.constant 0.000000e+00 : f32
    %73 = vector.shape_cast %35 : vector<1x256xi1> to vector<1x256xi1>
    %74 = vector.broadcast %73 : vector<1x256xi1> to vector<4x256xi1>
    %75 = vector.broadcast %cst_42 : f32 to vector<4x256xf32>
    %76 = arith.select %74, %75, %72 : vector<4x256xi1>, vector<4x256xf32>
    %c32_43 = arith.constant 32 : index
    %c0_44 = arith.constant 0 : index
    %77 = vector.load %arg7[%c32_43, %c0_44] : memref<36x256xf32, #tpu.memory_space<vmem>>, vector<4x256xf32>
    tpu.vector_store %arg7[%c32_43, %c0_44], %76 {strides = array<i32>} : memref<36x256xf32, #tpu.memory_space<vmem>>, vector<4x256xf32>,
    %c0_45 = arith.constant 0 : index
    %c0_46 = arith.constant 0 : index
    %78 = vector.load %arg2[%c0_45, %c0_46] : memref<4x36xf32, #tpu.memory_space<vmem>>, vector<4x36xf32>
    %c0_47 = arith.constant 0 : index
    %c0_48 = arith.constant 0 : index
    %79 = vector.load %arg7[%c0_47, %c0_48] : memref<36x256xf32, #tpu.memory_space<vmem>>, vector<36x256xf32>
    %cst_49 = arith.constant dense<0.000000e+00> : vector<4x256xf32>
    %80 = tpu.matmul %78, %79, %cst_49 {dimension_numbers = #tpu.dot_dimension_numbers<[1], [0], [0], [1], [0, 0, 1, 1], [], []>} : vector<4x36xf32>, vector<36x256xf32>, vector<4x256xf32> -> vector<4x256xf32>
    %c0_50 = arith.constant 0 : index
    %c0_51 = arith.constant 0 : index
    %c0_52 = arith.constant 0 : index
    %81 = vector.load %arg5[%c0_50, %c0_51, %c0_52] : memref<1x4x256xf32, #tpu.memory_space<vmem>>, vector<1x4x256xf32>
    %82 = vector.shape_cast %81 : vector<1x4x256xf32> to vector<4x256xf32>
    %83 = vector.shape_cast %80 : vector<4x256xf32> to vector<1x4x256xf32>
    tpu.vector_store %arg5[%c0_50, %c0_51, %c0_52], %83 {strides = array<i32>} : memref<1x4x256xf32, #tpu.memory_space<vmem>>, vector<1x4x256xf32>,
    return
  }
  func.func @transform_0(%arg0: i32) -> (i32, i32, i32) {
    %c0_i32 = arith.constant 0 : i32
    %c0_i32_0 = arith.constant 0 : i32
    %c0_i32_1 = arith.constant 0 : i32
    return %arg0, %c0_i32, %c0_i32_0 : i32, i32, i32
  }
  func.func @transform_1(%arg0: i32) -> (i32, i32) {
    %c0_i32 = arith.constant 0 : i32
    %c0_i32_0 = arith.constant 0 : i32
    %c0_i32_1 = arith.constant 0 : i32
    return %c0_i32, %c0_i32_0 : i32, i32
  }
  func.func @transform_2(%arg0: i32) -> (i32, i32) {
    %c0_i32 = arith.constant 0 : i32
    %c0_i32_0 = arith.constant 0 : i32
    %c0_i32_1 = arith.constant 0 : i32
    return %c0_i32, %c0_i32_0 : i32, i32
  }
  func.func @transform_3(%arg0: i32) -> (i32, i32) {
    %c0_i32 = arith.constant 0 : i32
    %c0_i32_0 = arith.constant 0 : i32
    %c0_i32_1 = arith.constant 0 : i32
    return %c0_i32, %c0_i32_0 : i32, i32
  }
  func.func @transform_4(%arg0: i32) -> (i32, i32, i32) {
    %c0_i32 = arith.constant 0 : i32
    %c0_i32_0 = arith.constant 0 : i32
    %c0_i32_1 = arith.constant 0 : i32
    return %arg0, %c0_i32, %c0_i32_0 : i32, i32, i32
  }
}

</mosaic_0001>

<llo_original>
// kernel: tpu_custom_call.1
$region0: #{tpu_custom_call.1}
  #allocation0 [shape = 'u32[]', space=smem, size = 0x4, offset = 0x4, fixed_abs, tag = 'smem constant byte address 0x4 - core index']
  #allocation1 [shape = 'u32[144,128]{1,0:T(1,128)}', space=vmem, size = 0x12000, scoped, tag = 'internal scratch']
  #allocation2 [shape = 'f32[4,290]{1,0:T(4,128)}', space=vmem, size = 0x1800, scoped, tag = 'scratch operand']
  #allocation3 [shape = 'f32[36,256]{1,0:T(8,128)}', space=vmem, size = 0xa000, scoped, tag = 'scratch operand']
  %s0 = inlined_call_operand.hbm [shape: f32[2,4,256], index: 0, kind: input, shape index: {}]
  %s1 = inlined_call_operand.vmem [shape: f32[4,36], index: 1, kind: input, shape index: {}]
  %s2 = inlined_call_operand.vmem [shape: f32[4,1], index: 2, kind: input, shape index: {}]
  %s3 = inlined_call_operand.vmem [shape: f32[4,1], index: 3, kind: input, shape index: {}]
  %s4 = inlined_call_operand.hbm [shape: f32[2,4,256], index: 4, kind: output, shape index: {}]
  %s5 = sld [smem:[#allocation0]]
  $region53: #{tpu_custom_call.1} parent=0
    _
  %s7 = ssub.s32 1, %s5
  %s8 = scalar_select 0, %s7, %s5
  $region1: #{tpu_custom_call.1} parent=0
    #allocation4 [shape = 'u8[8192]{0}', space=vmem, size = 0x2000, scoped, tag = 'input window, operand 0']
    #allocation5 [shape = 's32[2]{0}', space=sflag, size = 0x8, scoped, tag = 'scoped memory for tpu_custom_call.1']
    #allocation6 [shape = 's32[2]{0}', space=sflag, size = 0x8, scoped, tag = 'scoped memory for tpu_custom_call.1']
    #allocation7 [shape = 'u8[8192]{0}', space=vmem, size = 0x2000, scoped, tag = 'output window, operand 0']
    %9 = vsyncpa [#allocation5], 0
    %s10 = scalar_lea.sflag [#allocation5], 1
    %11 = vsyncpa %s10, 0
    %12 = vsyncpa [#allocation6], 0
    %s13 = scalar_lea.sflag [#allocation6], 1
    %14 = vsyncpa %s13, 0
    loop: start=0, step=1, limit=4
    $region2: #{tpu_custom_call.1} parent=1 // loop_pre_header
      _
    $region3: #{tpu_custom_call.1} parent=1 // loop_header
      %s16 = sphi 0, %s20
      %p17 = scmp.ge.s32.totalorder %s16, 4
      %s26 = sphi 0, %s28
      %s29 = sphi 0, %s26
      %s30 = sphi 0, %s29
      %s46 = sphi 0, %s30
      %s50 = sphi 0, %s50
      %s52 = sphi 0, %s50
      %s53 = sphi 0, %s52
      %s67 = sphi 0, %s53
      %s71 = sphi 0, %s71
      %s73 = sphi 0, %s71
      %s74 = sphi 0, %s73
      %s88 = sphi 0, %s74
      %s92 = sphi 0, %s92
      %s94 = sphi 0, %s92
      %s95 = sphi 0, %s94
      %s109 = sphi 0, %s95
      %s115 = sphi 0, %s117
      %s118 = sphi 0, %s115
      %s119 = sphi 0, %s118
      %s135 = sphi 0, %s119
    $region4: #{tpu_custom_call.1} parent=1 // loop_header_branch
      %19 = sbr.rel (%p17) target = $region8
    $region5: #{tpu_custom_call.1} parent=1 // loop_body
      %s21 = ssub.s32 %s16, 1
      %s22 = ssub.s32 %s16, 2
      %s23 = sadd.s32 %s16, 1
      %s24 = ssub.s32 %s16, %s23
      %p25 = scmp.eq.s32.totalorder %s24, 0
      %s27 = sadd.s32 %s26, 1
      %s28 = scalar_select %p25, %s26, %s27
      %p31 = pneg %p25
      %p32 = scmp.eq.s32.totalorder %s16, 1
      %p33 = por %p31, %p32
      %p34 = scmp.ne.s32.totalorder %s26, %s29
      %p35 = scmp.eq.s32.totalorder %s16, 0
      %p36 = por %p34, %p35
      %p37 = scmp.ne.s32.totalorder %s26, %s29
      %p38 = scmp.eq.s32.totalorder %s21, 1
      %p39 = por %p37, %p38
      %p40 = scmp.ne.s32.totalorder %s29, %s30
      %p41 = scmp.eq.s32.totalorder %s21, 0
      %p42 = por %p40, %p41
      %p43 = scmp.ne.s32.totalorder %s29, %s30
      %p44 = scmp.eq.s32.totalorder %s22, 1
      %p45 = por %p43, %p44
      %p47 = scmp.ne.s32.totalorder %s30, %s46
      %p48 = scmp.eq.s32.totalorder %s22, 0
      %p49 = por %p47, %p48
      %s51 = sadd.s32 %s50, 1
      %p54 = scmp.eq.s32.totalorder %s16, 1
      %p55 = scmp.ne.s32.totalorder %s50, %s52
      %p56 = scmp.eq.s32.totalorder %s16, 0
      %p57 = por %p55, %p56
      %p58 = scmp.ne.s32.totalorder %s50, %s52
      %p59 = scmp.eq.s32.totalorder %s21, 1
      %p60 = por %p58, %p59
      %p61 = scmp.ne.s32.totalorder %s52, %s53
      %p62 = scmp.eq.s32.totalorder %s21, 0
      %p63 = por %p61, %p62
      %p64 = scmp.ne.s32.totalorder %s52, %s53
      %p65 = scmp.eq.s32.totalorder %s22, 1
      %p66 = por %p64, %p65
      %p68 = scmp.ne.s32.totalorder %s53, %s67
      %p69 = scmp.eq.s32.totalorder %s22, 0
      %p70 = por %p68, %p69
      %s72 = sadd.s32 %s71, 1
      %p75 = scmp.eq.s32.totalorder %s16, 1
      %p76 = scmp.ne.s32.totalorder %s71, %s73
      %p77 = scmp.eq.s32.totalorder %s16, 0
      %p78 = por %p76, %p77
      %p79 = scmp.ne.s32.totalorder %s71, %s73
      %p80 = scmp.eq.s32.totalorder %s21, 1
      %p81 = por %p79, %p80
      %p82 = scmp.ne.s32.totalorder %s73, %s74
      %p83 = scmp.eq.s32.totalorder %s21, 0
      %p84 = por %p82, %p83
      %p85 = scmp.ne.s32.totalorder %s73, %s74
      %p86 = scmp.eq.s32.totalorder %s22, 1
      %p87 = por %p85, %p86
      %p89 = scmp.ne.s32.totalorder %s74, %s88
      %p90 = scmp.eq.s32.totalorder %s22, 0
      %p91 = por %p89, %p90
      %s93 = sadd.s32 %s92, 1
      %p96 = scmp.eq.s32.totalorder %s16, 1
      %p97 = scmp.ne.s32.totalorder %s92, %s94
      %p98 = scmp.eq.s32.totalorder %s16, 0
      %p99 = por %p97, %p98
      %p100 = scmp.ne.s32.totalorder %s92, %s94
      %p101 = scmp.eq.s32.totalorder %s21, 1
      %p102 = por %p100, %p101
      %p103 = scmp.ne.s32.totalorder %s94, %s95
      %p104 = scmp.eq.s32.totalorder %s21, 0
      %p105 = por %p103, %p104
      %p106 = scmp.ne.s32.totalorder %s94, %s95
      %p107 = scmp.eq.s32.totalorder %s22, 1
      %p108 = por %p106, %p107
      %p110 = scmp.ne.s32.totalorder %s95, %s109
      %p111 = scmp.eq.s32.totalorder %s22, 0
      %p112 = por %p110, %p111
      %s113 = ssub.s32 %s16, %s23
      %p114 = scmp.eq.s32.totalorder %s113, 0
      %s116 = sadd.s32 %s115, 1
      %s117 = scalar_select %p114, %s115, %s116
      %p120 = pneg %p114
      %p121 = scmp.eq.s32.totalorder %s16, 1
      %p122 = por %p120, %p121
      %p123 = scmp.ne.s32.totalorder %s115, %s118
      %p124 = scmp.eq.s32.totalorder %s16, 0
      %p125 = por %p123, %p124
      %p126 = scmp.ne.s32.totalorder %s115, %s118
      %p127 = scmp.eq.s32.totalorder %s21, 1
      %p128 = por %p126, %p127
      %p129 = scmp.ne.s32.totalorder %s118, %s119
      %p130 = scmp.eq.s32.totalorder %s21, 0
      %p131 = por %p129, %p130
      %p132 = scmp.ne.s32.totalorder %s118, %s119
      %p133 = scmp.eq.s32.totalorder %s22, 1
      %p134 = por %p132, %p133
      %p136 = scmp.ne.s32.totalorder %s119, %s135
      %p137 = scmp.eq.s32.totalorder %s22, 0
      %p138 = por %p136, %p137
      %p139 = scmp.le.s32.totalorder 1, %s16
      %p140 = scmp.lt.s32.totalorder %s16, 3
      %p141 = pnand %p139, %p140
      %p142 = pneg %p141
      // Predicated region
      $region9: #{tpu_custom_call.1} parent=5 // pred_check
        _
      $region10: #{tpu_custom_call.1} parent=5 // pred_check_branch
        %144 = sbr.rel (%p141) target = $region12
      $region11: #{tpu_custom_call.1} parent=5 // pred_region
        %s145 = ssub.s32 %s16, 1
        // Predicated region
        $region13: #{tpu_custom_call.1} parent=11 // pred_check
          %p146 = pneg %p63
        $region14: #{tpu_custom_call.1} parent=11 // pred_check_branch
          %148 = sbr.rel (%p146) target = $region16
        $region15: #{tpu_custom_call.1} parent=11 // pred_region
          _
        $region16: #{tpu_custom_call.1} parent=11 // pred_fallthru
          _
        // Predicated region
        $region17: #{tpu_custom_call.1} parent=11 // pred_check
          %p149 = pneg %p84
        $region18: #{tpu_custom_call.1} parent=11 // pred_check_branch
          %151 = sbr.rel (%p149) target = $region20
        $region19: #{tpu_custom_call.1} parent=11 // pred_region
          _
        $region20: #{tpu_custom_call.1} parent=11 // pred_fallthru
          _
        // Predicated region
        $region21: #{tpu_custom_call.1} parent=11 // pred_check
          %p152 = pneg %p105
        $region22: #{tpu_custom_call.1} parent=11 // pred_check_branch
          %154 = sbr.rel (%p152) target = $region24
        $region23: #{tpu_custom_call.1} parent=11 // pred_region
          _
        $region24: #{tpu_custom_call.1} parent=11 // pred_fallthru
          _
      $region12: #{tpu_custom_call.1} parent=5 // pred_fallthru
        _
      %p155 = scmp.lt.s32.totalorder %s16, 2
      // Predicated region
      $region25: #{tpu_custom_call.1} parent=5 // pred_check
        %p156 = pneg %p155
      $region26: #{tpu_custom_call.1} parent=5 // pred_check_branch
        %158 = sbr.rel (%p156) target = $region28
      $region27: #{tpu_custom_call.1} parent=5 // pred_region
        // Predicated region
        $region29: #{tpu_custom_call.1} parent=27 // pred_check
          %p159 = pneg %p36
        $region30: #{tpu_custom_call.1} parent=27 // pred_check_branch
          %161 = sbr.rel (%p159) target = $region32
        $region31: #{tpu_custom_call.1} parent=27 // pred_region
          %s162 = sand.u32 %s26, 1
          %s163 = scalar_lea.sflag [#allocation5], %s162
          %s164 = sand.u32 %s26, 1
          %s165 = smul.addr %s164, 8
          %s166 = scalar_lea.vmem [#allocation4], %s165
          %s168 = ssub.s32 128, 128
          %169 = vsyncadd %s163, %s168
          %s170 = smul.addr %s16, 2
          %s171 = smul.addr %s170, 64
          %s172 = scalar_lea.hbm %s0, %s171
          %s174 = sshll.u32 %s166, 4
          %s175 = int_to_ptr.vmem [resolvable:$true] %s174
          %177 = dma.hbm_to_vmem [thread:$0]  %s172, 128, %s175, %s163
        $region32: #{tpu_custom_call.1} parent=27 // pred_fallthru
          _
      $region28: #{tpu_custom_call.1} parent=5 // pred_fallthru
        _
      %p178 = scmp.le.s32.totalorder 1, %s16
      %p179 = scmp.lt.s32.totalorder %s16, 3
      %p180 = pnand %p178, %p179
      %p181 = pneg %p180
      // Predicated region
      $region33: #{tpu_custom_call.1} parent=5 // pred_check
        _
      $region34: #{tpu_custom_call.1} parent=5 // pred_check_branch
        %183 = sbr.rel (%p180) target = $region36
      $region35: #{tpu_custom_call.1} parent=5 // pred_region
        %s184 = ssub.s32 %s16, 1
        %s185 = sand.u32 %s29, 1
        %s186 = scalar_lea.sflag [#allocation5], %s185
        %s187 = sand.u32 %s29, 1
        %s188 = smul.addr %s187, 8
        %s189 = scalar_lea.vmem [#allocation4], %s188
        // Predicated region
        $region37: #{tpu_custom_call.1} parent=35 // pred_check
          %p190 = pneg %p42
        $region38: #{tpu_custom_call.1} parent=35 // pred_check_branch
          %192 = sbr.rel (%p190) target = $region40
        $region39: #{tpu_custom_call.1} parent=35 // pred_region
          %193 = dma.done %s186, 128
        $region40: #{tpu_custom_call.1} parent=35 // pred_fallthru
          _
        %s194 = sand.u32 %s29, 1
        %s195 = scalar_lea.sflag [#allocation5], %s194
        %s196 = sand.u32 %s29, 1
        %s197 = smul.addr %s196, 8
        %s198 = scalar_lea.vmem [#allocation4], %s197
        %p199 = pneg %p42
        %p200 = pneg %p39
        %p201 = pneg %p63
        %p202 = pneg %p60
        %p203 = pneg %p84
        %p204 = pneg %p81
        %p205 = pneg %p105
        %p206 = pneg %p102
        %p207 = pneg %p131
        %p208 = pneg %p128
        %s209 = sand.u32 %s118, 1
        %s210 = scalar_lea.sflag [#allocation6], %s209
        %s211 = sand.u32 %s118, 1
        %s212 = smul.addr %s211, 8
        %s213 = scalar_lea.vmem [#allocation7], %s212
        %v214 = vld [vmem:[%s189] sm:$0xff]
        %v215 = vld [vmem:[%s2] sm:$0xf]
        %217 = vset.pattern.permute.xlu0 0
        %218 = vperm.xlu0 %217, %v215
        %v219 = vpop.permute.xlu0 %218
        %v221 = vunpack.c.l.s4 839922192
        %v222 = vunpack.c.0.s8 %v221
        %v223 = vlaneseq
        %v224 = vshrl.u32 %v223, 7
        %v225 = vsub.s32 %v222, %v224
        %v226 = vrot.slane %v219, %v225
        %v228 = vmul.f32 %v214, %v226
        %v229 = vld [vmem:[%s3] sm:$0xf]
        %231 = vset.pattern.permute.xlu0 0
        %232 = vperm.xlu0 %231, %v229
        %v233 = vpop.permute.xlu0 %232
        %v235 = vunpack.c.l.s4 839922192
        %v236 = vunpack.c.0.s8 %v235
        %v237 = vlaneseq
        %v238 = vshrl.u32 %v237, 7
        %v239 = vsub.s32 %v236, %v238
        %v240 = vrot.slane %v233, %v239
        %v242 = vadd.f32 %v228, %v240
        %v243 = vmax.f32 %v242, 0.0
        %vm244 = vcmask 134144
        %245 = vst.msk [vmem:[#allocation2] sm:$0xf] %vm244, 0.0
        %vm246 = vcmask 273544
        %247 = vst.msk [vmem:[#allocation2 + $0x8] sm:$0xf] %vm246, 0.0
        %249 = vrot.lane.b32.xlu0 %v243, 17
        %v250 = vpop.permute.xlu0 %249
        %v251 = vrot.slane %v250, 4
        %vm252 = vcmask 138240
        %v253 = vsel %vm252, %v251, %v250
        %vm256 = vcmask 1043592
        %vm257 = vcmask 1047556
        %vm258 = vmor %vm257, %vm256
        %259 = vst.msk [vmem:[#allocation2] sm:$0xff] %vm258, %v253
        %260 = vst.msk [vmem:[#allocation2 + $0x8] sm:$0xf] %vm244, %v251
        %v261 = vlaneseq
        %v262 = vand.u32 %v261, 127
        %v263 = vadd.s32 %v262, 128
        %vm264 = vcmp.lt.s32.totalorder %v262, 0
        %v265 = vsub.s32 0, %v262
        %v266 = vsel %vm264, %v265, %v262
        %v267 = vshrl.u32 %v266, 4
        %v268 = vand.u32 %v266, 15
        %v269 = vsub.s32 0, %v268
        %v270 = vsel %vm264, %v269, %v268
        %vm271 = vcmp.lt.s32.totalorder %v263, 0
        %v272 = vsub.s32 0, %v263
        %v273 = vsel %vm271, %v272, %v263
        %v274 = vshrl.u32 %v273, 4
        %v275 = vand.u32 %v273, 15
        %v276 = vsub.s32 0, %v275
        %v277 = vsel %vm271, %v276, %v275
        %vm278 = vcmp.ne.s32.totalorder %v270, 0
        %vm279 = vcmp.ne.s32.totalorder %v277, 0
        %vm280 = vcmp.lt.s32.totalorder %v270, 0
        %vm281 = vcmp.lt.s32.totalorder %v277, 0
        %vm282 = vmand %vm280, %vm278
        %vm283 = vmand %vm281, %vm279
        %v284 = vadd.s32 %v270, 16
        %v285 = vadd.s32 %v277, 16
        %v286 = vsel %vm282, %v284, %v270
        %v287 = vsel %vm283, %v285, %v277
        %vm288 = vcmp.eq.s32.totalorder %v286, 0
        %vm289 = vcmp.eq.s32.totalorder %v287, 0
        %vm290 = vcmp.eq.s32.totalorder %v286, 15
        %vm291 = vcmp.eq.s32.totalorder %v287, 15
        %v292 = vld [vmem:[#allocation2] sm:$0xff]
        %v293 = vsel %vm288, 1, 0
        %v294 = vsel %vm289, 1, 0
        %vm295 = vcmp.eq.s32.totalorder %v293, 1
        %vm296 = vcmp.eq.s32.totalorder %v294, 1
        %v298 = vcombine.high %v292, %v292
        %v300 = vsel %vm295, 0.0, %v292
        %v301 = vsel %vm296, 0.0, %v298
        %302 = vst [vmem:[#allocation3] sm:$0xf] %v300
        %303 = vst [vmem:[#allocation3 + $0x8] sm:$0xf] %v301
        %v304 = vld [vmem:[#allocation2] sm:$0xff]
        %v305 = vld [vmem:[#allocation2 + $0x8] sm:$0xf]
        %v308 = vcombine.low %v304, %v304
        %v309 = vcombine.low %v305, %v305
        %310 = vrot.lane.b32.xlu0 %v308, 127
        %v311 = vpop.permute.xlu0 %310
        %312 = vrot.lane.b32.xlu0 %v304, 127
        %v313 = vpop.permute.xlu0 %312
        %314 = vrot.lane.b32.xlu0 %v309, 127
        %v315 = vpop.permute.xlu0 %314
        %vm316 = vcmask 1039360
        %v317 = vsel %vm316, %v311, %v313
        %v318 = vsel %vm316, %v313, %v315
        %321 = vst [vmem:[#allocation3] sm:$0xf0] %v317
        %322 = vst [vmem:[#allocation3 + $0x8] sm:$0xf0] %v318
        %v323 = vld [vmem:[#allocation2] sm:$0xff]
        %v324 = vld [vmem:[#allocation2 + $0x8] sm:$0xf]
        %v325 = vsel %vm290, 1, 0
        %v326 = vsel %vm291, 1, 0
        %vm327 = vcmp.eq.s32.totalorder %v325, 1
        %vm328 = vcmp.eq.s32.totalorder %v326, 1
        %v331 = vcombine.high %v323, %v323
        %332 = vrot.lane.b32.xlu0 %v323, 126
        %v333 = vpop.permute.xlu0 %332
        %334 = vrot.lane.b32.xlu0 %v331, 126
        %v335 = vpop.permute.xlu0 %334
        %336 = vrot.lane.b32.xlu0 %v324, 126
        %v337 = vpop.permute.xlu0 %336
        %vm338 = vcmask 1031168
        %v339 = vsel %vm338, %v333, %v335
        %v340 = vsel %vm338, %v335, %v337
        %v343 = vsel %vm327, 0.0, %v339
        %v344 = vsel %vm328, 0.0, %v340
        %345 = vst [vmem:[#allocation3 + $0x10] sm:$0xf] %v343
        %346 = vst [vmem:[#allocation3 + $0x18] sm:$0xf] %v344
        %v347 = vld [vmem:[#allocation2] sm:$0xff]
        %v348 = vld [vmem:[#allocation2 + $0x8] sm:$0xf]
        %v351 = vcombine.high %v347, %v347
        %352 = vrot.lane.b32.xlu0 %v347, 112
        %v353 = vpop.permute.xlu0 %352
        %354 = vrot.lane.b32.xlu0 %v351, 112
        %v355 = vpop.permute.xlu0 %354
        %356 = vrot.lane.b32.xlu0 %v348, 112
        %v357 = vpop.permute.xlu0 %356
        %vm358 = vcmask 916480
        %v359 = vsel %vm358, %v353, %v355
        %v360 = vsel %vm358, %v355, %v357
        %v363 = vsel %vm295, 0.0, %v359
        %v364 = vsel %vm296, 0.0, %v360
        %v367 = vrot.slane %v363, 4
        %v368 = vrot.slane %v364, 4
        %371 = vst [vmem:[#allocation3 + $0x10] sm:$0xf0] %v367
        %372 = vst [vmem:[#allocation3 + $0x18] sm:$0xf0] %v368
        %v373 = vld [vmem:[#allocation2] sm:$0xff]
        %v374 = vld [vmem:[#allocation2 + $0x8] sm:$0xf]
        %v377 = vcombine.high %v373, %v373
        %378 = vrot.lane.b32.xlu0 %v373, 111
        %v379 = vpop.permute.xlu0 %378
        %380 = vrot.lane.b32.xlu0 %v377, 111
        %v381 = vpop.permute.xlu0 %380
        %382 = vrot.lane.b32.xlu0 %v374, 111
        %v383 = vpop.permute.xlu0 %382
        %vm384 = vcmask 908288
        %v385 = vsel %vm384, %v379, %v381
        %v386 = vsel %vm384, %v381, %v383
        %389 = vst [vmem:[#allocation3 + $0x20] sm:$0xf] %v385
        %390 = vst [vmem:[#allocation3 + $0x28] sm:$0xf] %v386
        %v391 = vld [vmem:[#allocation2] sm:$0xff]
        %v392 = vld [vmem:[#allocation2 + $0x8] sm:$0xf]
        %v395 = vcombine.high %v391, %v391
        %396 = vrot.lane.b32.xlu0 %v391, 110
        %v397 = vpop.permute.xlu0 %396
        %398 = vrot.lane.b32.xlu0 %v395, 110
        %v399 = vpop.permute.xlu0 %398
        %400 = vrot.lane.b32.xlu0 %v392, 110
        %v401 = vpop.permute.xlu0 %400
        %vm402 = vcmask 900096
        %v403 = vsel %vm402, %v397, %v399
        %v404 = vsel %vm402, %v399, %v401
        %v407 = vsel %vm327, 0.0, %v403
        %v408 = vsel %vm328, 0.0, %v404
        %v411 = vrot.slane %v407, 4
        %v412 = vrot.slane %v408, 4
        %415 = vst [vmem:[#allocation3 + $0x20] sm:$0xf0] %v411
        %416 = vst [vmem:[#allocation3 + $0x28] sm:$0xf0] %v412
        %v417 = vld [vmem:[#allocation2] sm:$0xff]
        %v418 = vld [vmem:[#allocation2 + $0x8] sm:$0xf]
        %v421 = vcombine.high %v417, %v417
        %422 = vrot.lane.b32.xlu0 %v417, 96
        %v423 = vpop.permute.xlu0 %422
        %424 = vrot.lane.b32.xlu0 %v421, 96
        %v425 = vpop.permute.xlu0 %424
        %426 = vrot.lane.b32.xlu0 %v418, 96
        %v427 = vpop.permute.xlu0 %426
        %vm428 = vcmask 785408
        %v429 = vsel %vm428, %v423, %v425
        %v430 = vsel %vm428, %v425, %v427
        %v433 = vsel %vm295, 0.0, %v429
        %v434 = vsel %vm296, 0.0, %v430
        %435 = vst [vmem:[#allocation3 + $0x30] sm:$0xf] %v433
        %436 = vst [vmem:[#allocation3 + $0x38] sm:$0xf] %v434
        %v437 = vld [vmem:[#allocation2] sm:$0xff]
        %v438 = vld [vmem:[#allocation2 + $0x8] sm:$0xf]
        %v441 = vcombine.low %v437, %v437
        %v442 = vcombine.low %v438, %v438
        %443 = vrot.lane.b32.xlu0 %v441, 95
        %v444 = vpop.permute.xlu0 %443
        %445 = vrot.lane.b32.xlu0 %v437, 95
        %v446 = vpop.permute.xlu0 %445
        %447 = vrot.lane.b32.xlu0 %v442, 95
        %v448 = vpop.permute.xlu0 %447
        %vm449 = vcmask 777216
        %v450 = vsel %vm449, %v444, %v446
        %v451 = vsel %vm449, %v446, %v448
        %454 = vst [vmem:[#allocation3 + $0x30] sm:$0xf0] %v450
        %455 = vst [vmem:[#allocation3 + $0x38] sm:$0xf0] %v451
        %v456 = vld [vmem:[#allocation2] sm:$0xff]
        %v457 = vld [vmem:[#allocation2 + $0x8] sm:$0xf]
        %v460 = vcombine.high %v456, %v456
        %461 = vrot.lane.b32.xlu0 %v456, 94
        %v462 = vpop.permute.xlu0 %461
        %463 = vrot.lane.b32.xlu0 %v460, 94
        %v464 = vpop.permute.xlu0 %463
        %465 = vrot.lane.b32.xlu0 %v457, 94
        %v466 = vpop.permute.xlu0 %465
        %vm467 = vcmask 769024
        %v468 = vsel %vm467, %v462, %v464
        %v469 = vsel %vm467, %v464, %v466
        %v472 = vsel %vm327, 0.0, %v468
        %v473 = vsel %vm328, 0.0, %v469
        %474 = vst [vmem:[#allocation3 + $0x40] sm:$0xf] %v472
        %475 = vst [vmem:[#allocation3 + $0x48] sm:$0xf] %v473
        %v476 = vld [vmem:[%s1] sm:$0xf]
        %v477 = vld [vmem:[#allocation3] sm:$0xff]
        %v478 = vld [vmem:[#allocation3 + $0x8] sm:$0xff]
        %v479 = vld [vmem:[#allocation3 + $0x10] sm:$0xff]
        %v480 = vld [vmem:[#allocation3 + $0x18] sm:$0xff]
        %v481 = vld [vmem:[#allocation3 + $0x20] sm:$0xff]
        %v482 = vld [vmem:[#allocation3 + $0x28] sm:$0xff]
        %v483 = vld [vmem:[#allocation3 + $0x30] sm:$0xff]
        %v484 = vld [vmem:[#allocation3 + $0x38] sm:$0xff]
        %v485 = vld [vmem:[#allocation3 + $0x40] sm:$0xf]
        %v486 = vld [vmem:[#allocation3 + $0x48] sm:$0xf]
        %vm487 = vcmask 293888
        %v489 = vsel %vm487, %v476, 0
        %vm491 = vcmask 1043456
        %v493 = vsel %vm491, %v485, 0
        %v496 = vsel %vm491, %v486, 0
        %498 = vmatprep.subr.mxu0 %v478
        %499 = vmatpush1.msra.mxu0 %v477
        %500 = vmatprep.subr.mxu0 %v480
        %501 = vmatpush1.msra.mxu0 %v479
        %502 = vmatprep.subr.mxu0 %v482
        %503 = vmatpush1.msra.mxu0 %v481
        %504 = vmatprep.subr.mxu0 %v484
        %505 = vmatpush1.msra.mxu0 %v483
        %506 = vmatprep.subr.mxu0 %v496
        %507 = vmatpush1.msra.mxu0 %v493
        %508 = vmatprep.subr.mxu0 0.0
        %509 = vmatpush1.msra.mxu0 0.0
        %510 = vmatprep.subr.mxu0 0.0
        %511 = vmatpush1.msra.mxu0 0.0
        %512 = vmatprep.subr.mxu0 0.0
        %513 = vmatpush1.msra.mxu0 0.0
        %514 = vmatprep.subr.mxu0 0.0
        %515 = vmatpush1.msra.mxu0 0.0
        %516 = vmatprep.subr.mxu0 0.0
        %517 = vmatpush1.msra.mxu0 0.0
        %518 = vmatprep.subr.mxu0 0.0
        %519 = vmatpush1.msra.mxu0 0.0
        %520 = vmatprep.subr.mxu0 0.0
        %521 = vmatpush1.msra.mxu0 0.0
        %522 = vmatprep.subr.mxu0 0.0
        %523 = vmatpush1.msra.mxu0 0.0
        %524 = vmatprep.subr.mxu0 0.0
        %525 = vmatpush1.msra.mxu0 0.0
        %526 = vmatprep.subr.mxu0 0.0
        %527 = vmatpush1.msra.mxu0 0.0
        %528 = vmatprep.subr.mxu0 0.0
        %529 = vmatpush1.msra.mxu0 0.0
        %530 = vmatprep.subr.mxu0 0.0
        %531 = vmatpush1.msra.mxu0 0.0
        %532 = vmatprep.subr.mxu0 0.0
        %533 = vmatpush1.msra.mxu0 0.0
        %534 = vmatprep.subr.mxu0 0.0
        %535 = vmatpush1.msra.mxu0 0.0
        %536 = vmatprep.subr.mxu0 0.0
        %537 = vmatpush1.msra.mxu0 0.0
        %538 = vmatprep.subr.mxu0 0.0
        %539 = vmatpush1.msra.mxu0 0.0
        %540 = vmatprep.subr.mxu0 0.0
        %541 = vmatpush1.msra.mxu0 0.0
        %542 = vmatprep.subr.mxu0 0.0
        %543 = vmatpush1.msra.mxu0 0.0
        %544 = vmatprep.subr.mxu0 0.0
        %545 = vmatpush1.msra.mxu0 0.0
        %546 = vmatprep.subr.mxu0 0.0
        %547 = vmatpush1.msra.mxu0 0.0
        %548 = vmatprep.subr.mxu0 0.0
        %549 = vmatpush1.msra.mxu0 0.0
        %550 = vmatprep.subr.mxu0 0.0
        %551 = vmatpush1.msra.mxu0 0.0
        %552 = vmatprep.subr.mxu0 0.0
        %553 = vmatpush1.msra.mxu0 0.0
        %554 = vmatprep.subr.mxu0 0.0
        %555 = vmatpush1.msra.mxu0 0.0
        %556 = vmatprep.subr.mxu0 0.0
        %557 = vmatpush1.msra.mxu0 0.0
        %558 = vmatprep.subr.mxu0 0.0
        %559 = vmatpush1.msra.mxu0 0.0
        %560 = vmatprep.subr.mxu0 0.0
        %561 = vmatpush1.msra.mxu0 0.0
        %562 = vmatprep.mubr.f32.mxu0 0.0
        %563 = vmatmul.mubr.f32.gmra.mrb[0].mxu0 %v489
        %v564 = vpop.f32.mrb[0].mxu0
        %v565 = vadd.f32 0.0, %v564
        %v566 = vpop.f32.mrb[0].mxu0
        %v567 = vadd.f32 0.0, %v566
        %568 = vdwg.mxu0
        %v571 = vcombine.low %v565, %v567
        %573 = vst [vmem:[%s213] sm:$0xff] %v571
        %s574 = sand.u32 %s118, 1
        %s575 = scalar_lea.sflag [#allocation6], %s574
        %s576 = sand.u32 %s118, 1
        %s577 = smul.addr %s576, 8
        %s578 = scalar_lea.vmem [#allocation7], %s577
        // Predicated region
        $region41: #{tpu_custom_call.1} parent=35 // pred_check
          %p579 = pneg %p128
        $region42: #{tpu_custom_call.1} parent=35 // pred_check_branch
          %581 = sbr.rel (%p579) target = $region44
        $region43: #{tpu_custom_call.1} parent=35 // pred_region
          %s583 = ssub.s32 128, 128
          %584 = vsyncadd %s575, %s583
          %s585 = smul.addr %s21, 2
          %s586 = smul.addr %s585, 64
          %s587 = scalar_lea.hbm %s4, %s586
          %s589 = sshll.u32 %s578, 4
          %s590 = int_to_ptr.vmem [resolvable:$true] %s589
          %592 = dma.vmem_to_hbm [thread:$0]  %s590, 128, %s587, %s575
        $region44: #{tpu_custom_call.1} parent=35 // pred_fallthru
          _
      $region36: #{tpu_custom_call.1} parent=5 // pred_fallthru
        _
      %p593 = scmp.le.s32.totalorder 2, %s16
      // Predicated region
      $region45: #{tpu_custom_call.1} parent=5 // pred_check
        %p594 = pneg %p593
      $region46: #{tpu_custom_call.1} parent=5 // pred_check_branch
        %596 = sbr.rel (%p594) target = $region48
      $region47: #{tpu_custom_call.1} parent=5 // pred_region
        %s597 = ssub.s32 %s16, 2
        // Predicated region
        $region49: #{tpu_custom_call.1} parent=47 // pred_check
          %p598 = pneg %p134
        $region50: #{tpu_custom_call.1} parent=47 // pred_check_branch
          %600 = sbr.rel (%p598) target = $region52
        $region51: #{tpu_custom_call.1} parent=47 // pred_region
          %s601 = sand.u32 %s119, 1
          %s602 = scalar_lea.sflag [#allocation6], %s601
          %s603 = sand.u32 %s119, 1
          %s604 = smul.addr %s603, 8
          %s605 = scalar_lea.vmem [#allocation7], %s604
          %606 = dma.done %s602, 128
        $region52: #{tpu_custom_call.1} parent=47 // pred_fallthru
          _
      $region48: #{tpu_custom_call.1} parent=5 // pred_fallthru
        _
    $region6: #{tpu_custom_call.1} parent=1 // loop_footer
      %s20 = sadd.s32 1, %s16
    $region7: #{tpu_custom_call.1} parent=1 // loop_footer_branch
      %15 = sbr.rel target = $region3
    $region8: #{tpu_custom_call.1} parent=1 // loop_exit
      _
    %607 = vsyncpa [#allocation5], 1
    %s608 = scalar_lea.sflag [#allocation5], 1
    %609 = vsyncpa %s608, 1
    %610 = vsyncpa [#allocation6], 1
    %s611 = scalar_lea.sflag [#allocation6], 1
    %612 = vsyncpa %s611, 1

</llo_original>
